<compile_context>
chip_gen: v7x
topology: tpu7x:2x2x1
jax: 0.10.0
libtpu: 0.0.40
codegen_flags: <defaults>
</compile_context>

<pallas_src>
import jax
import jax.numpy as jnp
from jax import lax
from jax.experimental import pallas as pl
from jax.experimental.pallas import tpu as pltpu


# ------------------------------ fused wrapper ------------------------------- #

def depthwise_separable_conv(x, w_dw, w_pw, bn_gamma, bn_beta, bn_mean, bn_var,
                             eps=1e-5):
    """x: (B, C, H, W) f32 -> (B, O, H, W) f32 (eval-mode forward)."""
    B, C, H, W = x.shape
    O = w_pw.shape[0]
    HW = H * W
    HWC = HW * C
    P = (W + 1) * C                      # halo: largest |flattened 3x3 tap shift|

    # --- one small XLA producer op: channel-last flatten + zero halo ---------
    # xcl[b, (h*W + w)*C + c] = x[b, c, h, w]
    xcl = jnp.transpose(x, (0, 2, 3, 1)).reshape(B, HWC)
    xpad = jnp.pad(xcl, ((0, 0), (P, P)))                        # (B, HWC + 2P)

    # w-boundary 0/1 masks (compile-time constants, folded by XLA): valid output
    # positions for taps with dx = -1 (mask_l) / dx = +1 (mask_r).
    w_idx = (jnp.arange(HWC, dtype=jnp.int32) // C) % W
    mask_l = (w_idx >= 1).astype(jnp.float32).reshape(1, HWC)
    mask_r = (w_idx <= W - 2).astype(jnp.float32).reshape(1, HWC)

    # BatchNorm (eval) folded to one scale/shift per output channel.  (ReLU sits
    # between the 1x1 conv and BN, so scale cannot be folded into w_pw.)
    scale = bn_gamma / jnp.sqrt(bn_var + eps)
    shift = bn_beta - bn_mean * scale

    def kernel(k_ref, pw_ref, scale_ref, shift_ref, xpad_ref, ml_ref, mr_ref,
               o_ref):
        WC = W * C

        def tap(s):
            # t[b, m] = xcl[b, m + s]  (zeros outside the image via the halo)
            return xpad_ref[:, pl.ds(P + s, HWC)]

        # ---- depthwise 3x3 (single shared filter), all B*C images at once ----
        # grouped by kernel column so only two mask multiplies are needed.
        mid = (k_ref[0, 1] * tap(-WC) + k_ref[1, 1] * tap(0)
               + k_ref[2, 1] * tap(WC))
        left = (k_ref[0, 0] * tap(-WC - C) + k_ref[1, 0] * tap(-C)
                + k_ref[2, 0] * tap(WC - C))
        right = (k_ref[0, 2] * tap(-WC + C) + k_ref[1, 2] * tap(C)
                 + k_ref[2, 2] * tap(WC + C))
        u = mid + left * ml_ref[...] + right * mr_ref[...]        # (B, HWC)

        # u is the depthwise output in channel-last flat order, which IS the
        # torch stack(dim=-1).view(B, C, H, W) scramble: scrambled channel c is
        # the contiguous slice u[:, c*HW:(c+1)*HW] (pure index arithmetic).
        # ---- pointwise 1x1 + ReLU + BN(eval) + Dropout(eval=identity) --------
        # K=C, M=O are tiny: VPU broadcast multiply-adds batched over all B.
        for o in range(O):
            acc = pw_ref[o, 0] * u[:, 0:HW]
            for c in range(1, C):
                acc = acc + pw_ref[o, c] * u[:, c * HW:(c + 1) * HW]
            res = jnp.maximum(acc, 0.0) * scale_ref[o] + shift_ref[o]
            o_ref[:, o, :] = res.astype(o_ref.dtype)

    out = pl.pallas_call(
        kernel,
        out_shape=jax.ShapeDtypeStruct((B, O, HW), jnp.float32),
        in_specs=[
            pl.BlockSpec(memory_space=pltpu.MemorySpace.SMEM),   # 3x3 filter
            pl.BlockSpec(memory_space=pltpu.MemorySpace.SMEM),   # (O, C) 1x1 weight
            pl.BlockSpec(memory_space=pltpu.MemorySpace.SMEM),   # BN scale (O,)
            pl.BlockSpec(memory_space=pltpu.MemorySpace.SMEM),   # BN shift (O,)
            pl.BlockSpec(memory_space=pltpu.MemorySpace.VMEM),   # padded input
            pl.BlockSpec(memory_space=pltpu.MemorySpace.VMEM),   # mask_l
            pl.BlockSpec(memory_space=pltpu.MemorySpace.VMEM),   # mask_r
        ],
        out_specs=pl.BlockSpec(memory_space=pltpu.MemorySpace.VMEM),
    )(w_dw, w_pw, scale, shift, xpad, mask_l, mask_r)

    return out.reshape(B, O, H, W)


# --------------------------- pure-JAX reference ----------------------------- #

def _reference(x, w_dw, w_pw, gamma, beta, mean, var, eps=1e-5):
    B, C, H, W = x.shape
    xr = x.reshape(B * C, 1, H, W)
    k = w_dw.reshape(1, 1, 3, 3)
    dw = lax.conv_general_dilated(xr, k, (1, 1), ((1, 1), (1, 1)))
    dw = dw.reshape(B, C, H, W)
    # torch.stack(dim=-1) then .view(B, C, H, W) on the contiguous result
    y = jnp.transpose(dw, (0, 2, 3, 1)).reshape(B, C, H, W)
    out = jnp.einsum("oc,bchw->bohw", w_pw, y)
    out = jnp.maximum(out, 0.0)
    out = (out - mean[None, :, None, None]) / jnp.sqrt(var[None, :, None, None] + eps)
    out = out * gamma[None, :, None, None] + beta[None, :, None, None]
    return out


# ---------------------------------- main ------------------------------------ #

if __name__ == "__main__":
    B, C_IN, C_OUT, H, W = 2, 4, 8, 16, 16

    key = jax.random.PRNGKey(0)
    kx, kdw, kpw = jax.random.split(key, 3)

    x = jax.random.normal(kx, (B, C_IN, H, W), dtype=jnp.float32)
    # nn.Conv2d(1, 1, 3, bias=False) -> weight (1, 1, 3, 3); keep (3, 3)
    w_dw = jax.random.normal(kdw, (3, 3), dtype=jnp.float32) * 0.3
    # nn.Conv2d(in, out, 1, bias=False) -> weight (out, in, 1, 1); keep (out, in)
    w_pw = jax.random.normal(kpw, (C_OUT, C_IN), dtype=jnp.float32) * 0.3
    # BatchNorm2d(out) default parameters / running stats
    bn_gamma = jnp.ones((C_OUT,), jnp.float32)
    bn_beta = jnp.zeros((C_OUT,), jnp.float32)
    bn_mean = jnp.zeros((C_OUT,), jnp.float32)
    bn_var = jnp.ones((C_OUT,), jnp.float32)

    out = depthwise_separable_conv(x, w_dw, w_pw, bn_gamma, bn_beta, bn_mean, bn_var)
    out = jax.block_until_ready(out)

    ref = _reference(x, w_dw, w_pw, bn_gamma, bn_beta, bn_mean, bn_var)
    assert out.shape == (B, C_OUT, H, W), out.shape
    assert jnp.allclose(out, ref, atol=1e-4, rtol=1e-4), "mismatch vs reference"

    print("KERNEL_OK")
</pallas_src>

<mosaic_0001>
module attributes {stable_mosaic.version = 11 : i64} {
  func.func @kernel(%arg0: memref<3x3xf32, #tpu.memory_space<smem>>, %arg1: memref<8x4xf32, #tpu.memory_space<smem>>, %arg2: memref<8xf32, #tpu.memory_space<smem>>, %arg3: memref<8xf32, #tpu.memory_space<smem>>, %arg4: memref<2x1160xf32, #tpu.memory_space<vmem>>, %arg5: memref<1x1024xf32, #tpu.memory_space<vmem>>, %arg6: memref<1x1024xf32, #tpu.memory_space<vmem>>, %arg7: memref<2x8x256xf32, #tpu.memory_space<vmem>>) attributes {dimension_semantics = [], scalar_prefetch = 0 : i64, scratch_operands = 0 : i64, tpu.core_type = #tpu.core_type<tc>} {
    %c0 = arith.constant 0 : index
    %c1 = arith.constant 1 : index
    %0 = memref.load %arg0[%c0, %c1] : memref<3x3xf32, #tpu.memory_space<smem>>
    %c0_0 = arith.constant 0 : index
    %c4 = arith.constant 4 : index
    %1 = vector.load %arg4[%c0_0, %c4] : memref<2x1160xf32, #tpu.memory_space<vmem>>, vector<2x1024xf32>
    %2 = vector.broadcast %0 : f32 to vector<2x1024xf32>
    %3 = arith.mulf %2, %1 : vector<2x1024xf32>
    %c1_1 = arith.constant 1 : index
    %c1_2 = arith.constant 1 : index
    %4 = memref.load %arg0[%c1_1, %c1_2] : memref<3x3xf32, #tpu.memory_space<smem>>
    %c0_3 = arith.constant 0 : index
    %c68 = arith.constant 68 : index
    %5 = vector.load %arg4[%c0_3, %c68] : memref<2x1160xf32, #tpu.memory_space<vmem>>, vector<2x1024xf32>
    %6 = vector.broadcast %4 : f32 to vector<2x1024xf32>
    %7 = arith.mulf %6, %5 : vector<2x1024xf32>
    %8 = arith.addf %3, %7 : vector<2x1024xf32>
    %c2 = arith.constant 2 : index
    %c1_4 = arith.constant 1 : index
    %9 = memref.load %arg0[%c2, %c1_4] : memref<3x3xf32, #tpu.memory_space<smem>>
    %c0_5 = arith.constant 0 : index
    %c132 = arith.constant 132 : index
    %10 = vector.load %arg4[%c0_5, %c132] : memref<2x1160xf32, #tpu.memory_space<vmem>>, vector<2x1024xf32>
    %11 = vector.broadcast %9 : f32 to vector<2x1024xf32>
    %12 = arith.mulf %11, %10 : vector<2x1024xf32>
    %13 = arith.addf %8, %12 : vector<2x1024xf32>
    %c0_6 = arith.constant 0 : index
    %c0_7 = arith.constant 0 : index
    %14 = memref.load %arg0[%c0_6, %c0_7] : memref<3x3xf32, #tpu.memory_space<smem>>
    %c0_8 = arith.constant 0 : index
    %c0_9 = arith.constant 0 : index
    %15 = vector.load %arg4[%c0_8, %c0_9] : memref<2x1160xf32, #tpu.memory_space<vmem>>, vector<2x1024xf32>
    %16 = vector.broadcast %14 : f32 to vector<2x1024xf32>
    %17 = arith.mulf %16, %15 : vector<2x1024xf32>
    %c1_10 = arith.constant 1 : index
    %c0_11 = arith.constant 0 : index
    %18 = memref.load %arg0[%c1_10, %c0_11] : memref<3x3xf32, #tpu.memory_space<smem>>
    %c0_12 = arith.constant 0 : index
    %c64 = arith.constant 64 : index
    %19 = vector.load %arg4[%c0_12, %c64] : memref<2x1160xf32, #tpu.memory_space<vmem>>, vector<2x1024xf32>
    %20 = vector.broadcast %18 : f32 to vector<2x1024xf32>
    %21 = arith.mulf %20, %19 : vector<2x1024xf32>
    %22 = arith.addf %17, %21 : vector<2x1024xf32>
    %c2_13 = arith.constant 2 : index
    %c0_14 = arith.constant 0 : index
    %23 = memref.load %arg0[%c2_13, %c0_14] : memref<3x3xf32, #tpu.memory_space<smem>>
    %c0_15 = arith.constant 0 : index
    %c128 = arith.constant 128 : index
    %24 = vector.load %arg4[%c0_15, %c128] : memref<2x1160xf32, #tpu.memory_space<vmem>>, vector<2x1024xf32>
    %25 = vector.broadcast %23 : f32 to vector<2x1024xf32>
    %26 = arith.mulf %25, %24 : vector<2x1024xf32>
    %27 = arith.addf %22, %26 : vector<2x1024xf32>
    %c0_16 = arith.constant 0 : index
    %c2_17 = arith.constant 2 : index
    %28 = memref.load %arg0[%c0_16, %c2_17] : memref<3x3xf32, #tpu.memory_space<smem>>
    %c0_18 = arith.constant 0 : index
    %c8 = arith.constant 8 : index
    %29 = vector.load %arg4[%c0_18, %c8] : memref<2x1160xf32, #tpu.memory_space<vmem>>, vector<2x1024xf32>
    %30 = vector.broadcast %28 : f32 to vector<2x1024xf32>
    %31 = arith.mulf %30, %29 : vector<2x1024xf32>
    %c1_19 = arith.constant 1 : index
    %c2_20 = arith.constant 2 : index
    %32 = memref.load %arg0[%c1_19, %c2_20] : memref<3x3xf32, #tpu.memory_space<smem>>
    %c0_21 = arith.constant 0 : index
    %c72 = arith.constant 72 : index
    %33 = vector.load %arg4[%c0_21, %c72] : memref<2x1160xf32, #tpu.memory_space<vmem>>, vector<2x1024xf32>
    %34 = vector.broadcast %32 : f32 to vector<2x1024xf32>
    %35 = arith.mulf %34, %33 : vector<2x1024xf32>
    %36 = arith.addf %31, %35 : vector<2x1024xf32>
    %c2_22 = arith.constant 2 : index
    %c2_23 = arith.constant 2 : index
    %37 = memref.load %arg0[%c2_22, %c2_23] : memref<3x3xf32, #tpu.memory_space<smem>>
    %c0_24 = arith.constant 0 : index
    %c136 = arith.constant 136 : index
    %38 = vector.load %arg4[%c0_24, %c136] : memref<2x1160xf32, #tpu.memory_space<vmem>>, vector<2x1024xf32>
    %39 = vector.broadcast %37 : f32 to vector<2x1024xf32>
    %40 = arith.mulf %39, %38 : vector<2x1024xf32>
    %41 = arith.addf %36, %40 : vector<2x1024xf32>
    %c0_25 = arith.constant 0 : index
    %c0_26 = arith.constant 0 : index
    %42 = vector.load %arg5[%c0_25, %c0_26] : memref<1x1024xf32, #tpu.memory_space<vmem>>, vector<1x1024xf32>
    %43 = vector.broadcast %42 : vector<1x1024xf32> to vector<2x1024xf32>
    %44 = arith.mulf %27, %43 : vector<2x1024xf32>
    %45 = arith.addf %13, %44 : vector<2x1024xf32>
    %c0_27 = arith.constant 0 : index
    %c0_28 = arith.constant 0 : index
    %46 = vector.load %arg6[%c0_27, %c0_28] : memref<1x1024xf32, #tpu.memory_space<vmem>>, vector<1x1024xf32>
    %47 = vector.broadcast %46 : vector<1x1024xf32> to vector<2x1024xf32>
    %48 = arith.mulf %41, %47 : vector<2x1024xf32>
    %49 = arith.addf %45, %48 : vector<2x1024xf32>
    %c0_29 = arith.constant 0 : index
    %c0_30 = arith.constant 0 : index
    %50 = memref.load %arg1[%c0_29, %c0_30] : memref<8x4xf32, #tpu.memory_space<smem>>
    %51 = vector.extract_strided_slice %49 {offsets = [0, 0], sizes = [2, 256], strides = [1, 1]} : vector<2x1024xf32> to vector<2x256xf32>
    %52 = vector.broadcast %50 : f32 to vector<2x256xf32>
    %53 = arith.mulf %52, %51 : vector<2x256xf32>
    %c0_31 = arith.constant 0 : index
    %c1_32 = arith.constant 1 : index
    %54 = memref.load %arg1[%c0_31, %c1_32] : memref<8x4xf32, #tpu.memory_space<smem>>
    %55 = vector.extract_strided_slice %49 {offsets = [0, 256], sizes = [2, 256], strides = [1, 1]} : vector<2x1024xf32> to vector<2x256xf32>
    %56 = vector.broadcast %54 : f32 to vector<2x256xf32>
    %57 = arith.mulf %56, %55 : vector<2x256xf32>
    %58 = arith.addf %53, %57 : vector<2x256xf32>
    %c0_33 = arith.constant 0 : index
    %c2_34 = arith.constant 2 : index
    %59 = memref.load %arg1[%c0_33, %c2_34] : memref<8x4xf32, #tpu.memory_space<smem>>
    %60 = vector.extract_strided_slice %49 {offsets = [0, 512], sizes = [2, 256], strides = [1, 1]} : vector<2x1024xf32> to vector<2x256xf32>
    %61 = vector.broadcast %59 : f32 to vector<2x256xf32>
    %62 = arith.mulf %61, %60 : vector<2x256xf32>
    %63 = arith.addf %58, %62 : vector<2x256xf32>
    %c0_35 = arith.constant 0 : index
    %c3 = arith.constant 3 : index
    %64 = memref.load %arg1[%c0_35, %c3] : memref<8x4xf32, #tpu.memory_space<smem>>
    %65 = vector.extract_strided_slice %49 {offsets = [0, 768], sizes = [2, 256], strides = [1, 1]} : vector<2x1024xf32> to vector<2x256xf32>
    %66 = vector.broadcast %64 : f32 to vector<2x256xf32>
    %67 = arith.mulf %66, %65 : vector<2x256xf32>
    %68 = arith.addf %63, %67 : vector<2x256xf32>
    %cst = arith.constant 0.000000e+00 : f32
    %69 = vector.broadcast %cst : f32 to vector<2x256xf32>
    %70 = arith.maximumf %68, %69 : vector<2x256xf32>
    %c0_36 = arith.constant 0 : index
    %71 = memref.load %arg2[%c0_36] : memref<8xf32, #tpu.memory_space<smem>>
    %72 = vector.broadcast %71 : f32 to vector<2x256xf32>
    %73 = arith.mulf %70, %72 : vector<2x256xf32>
    %c0_37 = arith.constant 0 : index
    %74 = memref.load %arg3[%c0_37] : memref<8xf32, #tpu.memory_space<smem>>
    %75 = vector.broadcast %74 : f32 to vector<2x256xf32>
    %76 = arith.addf %73, %75 : vector<2x256xf32>
    %c0_38 = arith.constant 0 : index
    %c0_39 = arith.constant 0 : index
    %c0_40 = arith.constant 0 : index
    %77 = vector.load %arg7[%c0_38, %c0_39, %c0_40] : memref<2x8x256xf32, #tpu.memory_space<vmem>>, vector<2x1x256xf32>
    %78 = vector.shape_cast %77 : vector<2x1x256xf32> to vector<2x256xf32>
    %79 = vector.shape_cast %76 : vector<2x256xf32> to vector<2x1x256xf32>
    tpu.vector_store %arg7[%c0_38, %c0_39, %c0_40], %79 {strides = array<i32>} : memref<2x8x256xf32, #tpu.memory_space<vmem>>, vector<2x1x256xf32>,
    %c1_41 = arith.constant 1 : index
    %c0_42 = arith.constant 0 : index
    %80 = memref.load %arg1[%c1_41, %c0_42] : memref<8x4xf32, #tpu.memory_space<smem>>
    %81 = vector.extract_strided_slice %49 {offsets = [0, 0], sizes = [2, 256], strides = [1, 1]} : vector<2x1024xf32> to vector<2x256xf32>
    %82 = vector.broadcast %80 : f32 to vector<2x256xf32>
    %83 = arith.mulf %82, %81 : vector<2x256xf32>
    %c1_43 = arith.constant 1 : index
    %c1_44 = arith.constant 1 : index
    %84 = memref.load %arg1[%c1_43, %c1_44] : memref<8x4xf32, #tpu.memory_space<smem>>
    %85 = vector.extract_strided_slice %49 {offsets = [0, 256], sizes = [2, 256], strides = [1, 1]} : vector<2x1024xf32> to vector<2x256xf32>
    %86 = vector.broadcast %84 : f32 to vector<2x256xf32>
    %87 = arith.mulf %86, %85 : vector<2x256xf32>
    %88 = arith.addf %83, %87 : vector<2x256xf32>
    %c1_45 = arith.constant 1 : index
    %c2_46 = arith.constant 2 : index
    %89 = memref.load %arg1[%c1_45, %c2_46] : memref<8x4xf32, #tpu.memory_space<smem>>
    %90 = vector.extract_strided_slice %49 {offsets = [0, 512], sizes = [2, 256], strides = [1, 1]} : vector<2x1024xf32> to vector<2x256xf32>
    %91 = vector.broadcast %89 : f32 to vector<2x256xf32>
    %92 = arith.mulf %91, %90 : vector<2x256xf32>
    %93 = arith.addf %88, %92 : vector<2x256xf32>
    %c1_47 = arith.constant 1 : index
    %c3_48 = arith.constant 3 : index
    %94 = memref.load %arg1[%c1_47, %c3_48] : memref<8x4xf32, #tpu.memory_space<smem>>
    %95 = vector.extract_strided_slice %49 {offsets = [0, 768], sizes = [2, 256], strides = [1, 1]} : vector<2x1024xf32> to vector<2x256xf32>
    %96 = vector.broadcast %94 : f32 to vector<2x256xf32>
    %97 = arith.mulf %96, %95 : vector<2x256xf32>
    %98 = arith.addf %93, %97 : vector<2x256xf32>
    %cst_49 = arith.constant 0.000000e+00 : f32
    %99 = vector.broadcast %cst_49 : f32 to vector<2x256xf32>
    %100 = arith.maximumf %98, %99 : vector<2x256xf32>
    %c1_50 = arith.constant 1 : index
    %101 = memref.load %arg2[%c1_50] : memref<8xf32, #tpu.memory_space<smem>>
    %102 = vector.broadcast %101 : f32 to vector<2x256xf32>
    %103 = arith.mulf %100, %102 : vector<2x256xf32>
    %c1_51 = arith.constant 1 : index
    %104 = memref.load %arg3[%c1_51] : memref<8xf32, #tpu.memory_space<smem>>
    %105 = vector.broadcast %104 : f32 to vector<2x256xf32>
    %106 = arith.addf %103, %105 : vector<2x256xf32>
    %c0_52 = arith.constant 0 : index
    %c1_53 = arith.constant 1 : index
    %c0_54 = arith.constant 0 : index
    %107 = vector.load %arg7[%c0_52, %c1_53, %c0_54] : memref<2x8x256xf32, #tpu.memory_space<vmem>>, vector<2x1x256xf32>
    %108 = vector.shape_cast %107 : vector<2x1x256xf32> to vector<2x256xf32>
    %109 = vector.shape_cast %106 : vector<2x256xf32> to vector<2x1x256xf32>
    tpu.vector_store %arg7[%c0_52, %c1_53, %c0_54], %109 {strides = array<i32>} : memref<2x8x256xf32, #tpu.memory_space<vmem>>, vector<2x1x256xf32>,
    %c2_55 = arith.constant 2 : index
    %c0_56 = arith.constant 0 : index
    %110 = memref.load %arg1[%c2_55, %c0_56] : memref<8x4xf32, #tpu.memory_space<smem>>
    %111 = vector.extract_strided_slice %49 {offsets = [0, 0], sizes = [2, 256], strides = [1, 1]} : vector<2x1024xf32> to vector<2x256xf32>
    %112 = vector.broadcast %110 : f32 to vector<2x256xf32>
    %113 = arith.mulf %112, %111 : vector<2x256xf32>
    %c2_57 = arith.constant 2 : index
    %c1_58 = arith.constant 1 : index
    %114 = memref.load %arg1[%c2_57, %c1_58] : memref<8x4xf32, #tpu.memory_space<smem>>
    %115 = vector.extract_strided_slice %49 {offsets = [0, 256], sizes = [2, 256], strides = [1, 1]} : vector<2x1024xf32> to vector<2x256xf32>
    %116 = vector.broadcast %114 : f32 to vector<2x256xf32>
    %117 = arith.mulf %116, %115 : vector<2x256xf32>
    %118 = arith.addf %113, %117 : vector<2x256xf32>
    %c2_59 = arith.constant 2 : index
    %c2_60 = arith.constant 2 : index
    %119 = memref.load %arg1[%c2_59, %c2_60] : memref<8x4xf32, #tpu.memory_space<smem>>
    %120 = vector.extract_strided_slice %49 {offsets = [0, 512], sizes = [2, 256], strides = [1, 1]} : vector<2x1024xf32> to vector<2x256xf32>
    %121 = vector.broadcast %119 : f32 to vector<2x256xf32>
    %122 = arith.mulf %121, %120 : vector<2x256xf32>
    %123 = arith.addf %118, %122 : vector<2x256xf32>
    %c2_61 = arith.constant 2 : index
    %c3_62 = arith.constant 3 : index
    %124 = memref.load %arg1[%c2_61, %c3_62] : memref<8x4xf32, #tpu.memory_space<smem>>
    %125 = vector.extract_strided_slice %49 {offsets = [0, 768], sizes = [2, 256], strides = [1, 1]} : vector<2x1024xf32> to vector<2x256xf32>
    %126 = vector.broadcast %124 : f32 to vector<2x256xf32>
    %127 = arith.mulf %126, %125 : vector<2x256xf32>
    %128 = arith.addf %123, %127 : vector<2x256xf32>
    %cst_63 = arith.constant 0.000000e+00 : f32
    %129 = vector.broadcast %cst_63 : f32 to vector<2x256xf32>
    %130 = arith.maximumf %128, %129 : vector<2x256xf32>
    %c2_64 = arith.constant 2 : index
    %131 = memref.load %arg2[%c2_64] : memref<8xf32, #tpu.memory_space<smem>>
    %132 = vector.broadcast %131 : f32 to vector<2x256xf32>
    %133 = arith.mulf %130, %132 : vector<2x256xf32>
    %c2_65 = arith.constant 2 : index
    %134 = memref.load %arg3[%c2_65] : memref<8xf32, #tpu.memory_space<smem>>
    %135 = vector.broadcast %134 : f32 to vector<2x256xf32>
    %136 = arith.addf %133, %135 : vector<2x256xf32>
    %c0_66 = arith.constant 0 : index
    %c2_67 = arith.constant 2 : index
    %c0_68 = arith.constant 0 : index
    %137 = vector.load %arg7[%c0_66, %c2_67, %c0_68] : memref<2x8x256xf32, #tpu.memory_space<vmem>>, vector<2x1x256xf32>
    %138 = vector.shape_cast %137 : vector<2x1x256xf32> to vector<2x256xf32>
    %139 = vector.shape_cast %136 : vector<2x256xf32> to vector<2x1x256xf32>
    tpu.vector_store %arg7[%c0_66, %c2_67, %c0_68], %139 {strides = array<i32>} : memref<2x8x256xf32, #tpu.memory_space<vmem>>, vector<2x1x256xf32>,
    %c3_69 = arith.constant 3 : index
    %c0_70 = arith.constant 0 : index
    %140 = memref.load %arg1[%c3_69, %c0_70] : memref<8x4xf32, #tpu.memory_space<smem>>
    %141 = vector.extract_strided_slice %49 {offsets = [0, 0], sizes = [2, 256], strides = [1, 1]} : vector<2x1024xf32> to vector<2x256xf32>
    %142 = vector.broadcast %140 : f32 to vector<2x256xf32>
    %143 = arith.mulf %142, %141 : vector<2x256xf32>
    %c3_71 = arith.constant 3 : index
    %c1_72 = arith.constant 1 : index
    %144 = memref.load %arg1[%c3_71, %c1_72] : memref<8x4xf32, #tpu.memory_space<smem>>
    %145 = vector.extract_strided_slice %49 {offsets = [0, 256], sizes = [2, 256], strides = [1, 1]} : vector<2x1024xf32> to vector<2x256xf32>
    %146 = vector.broadcast %144 : f32 to vector<2x256xf32>
    %147 = arith.mulf %146, %145 : vector<2x256xf32>
    %148 = arith.addf %143, %147 : vector<2x256xf32>
    %c3_73 = arith.constant 3 : index
    %c2_74 = arith.constant 2 : index
    %149 = memref.load %arg1[%c3_73, %c2_74] : memref<8x4xf32, #tpu.memory_space<smem>>
    %150 = vector.extract_strided_slice %49 {offsets = [0, 512], sizes = [2, 256], strides = [1, 1]} : vector<2x1024xf32> to vector<2x256xf32>
    %151 = vector.broadcast %149 : f32 to vector<2x256xf32>
    %152 = arith.mulf %151, %150 : vector<2x256xf32>
    %153 = arith.addf %148, %152 : vector<2x256xf32>
    %c3_75 = arith.constant 3 : index
    %c3_76 = arith.constant 3 : index
    %154 = memref.load %arg1[%c3_75, %c3_76] : memref<8x4xf32, #tpu.memory_space<smem>>
    %155 = vector.extract_strided_slice %49 {offsets = [0, 768], sizes = [2, 256], strides = [1, 1]} : vector<2x1024xf32> to vector<2x256xf32>
    %156 = vector.broadcast %154 : f32 to vector<2x256xf32>
    %157 = arith.mulf %156, %155 : vector<2x256xf32>
    %158 = arith.addf %153, %157 : vector<2x256xf32>
    %cst_77 = arith.constant 0.000000e+00 : f32
    %159 = vector.broadcast %cst_77 : f32 to vector<2x256xf32>
    %160 = arith.maximumf %158, %159 : vector<2x256xf32>
    %c3_78 = arith.constant 3 : index
    %161 = memref.load %arg2[%c3_78] : memref<8xf32, #tpu.memory_space<smem>>
    %162 = vector.broadcast %161 : f32 to vector<2x256xf32>
    %163 = arith.mulf %160, %162 : vector<2x256xf32>
    %c3_79 = arith.constant 3 : index
    %164 = memref.load %arg3[%c3_79] : memref<8xf32, #tpu.memory_space<smem>>
    %165 = vector.broadcast %164 : f32 to vector<2x256xf32>
    %166 = arith.addf %163, %165 : vector<2x256xf32>
    %c0_80 = arith.constant 0 : index
    %c3_81 = arith.constant 3 : index
    %c0_82 = arith.constant 0 : index
    %167 = vector.load %arg7[%c0_80, %c3_81, %c0_82] : memref<2x8x256xf32, #tpu.memory_space<vmem>>, vector<2x1x256xf32>
    %168 = vector.shape_cast %167 : vector<2x1x256xf32> to vector<2x256xf32>
    %169 = vector.shape_cast %166 : vector<2x256xf32> to vector<2x1x256xf32>
    tpu.vector_store %arg7[%c0_80, %c3_81, %c0_82], %169 {strides = array<i32>} : memref<2x8x256xf32, #tpu.memory_space<vmem>>, vector<2x1x256xf32>,
    %c4_83 = arith.constant 4 : index
    %c0_84 = arith.constant 0 : index
    %170 = memref.load %arg1[%c4_83, %c0_84] : memref<8x4xf32, #tpu.memory_space<smem>>
    %171 = vector.extract_strided_slice %49 {offsets = [0, 0], sizes = [2, 256], strides = [1, 1]} : vector<2x1024xf32> to vector<2x256xf32>
    %172 = vector.broadcast %170 : f32 to vector<2x256xf32>
    %173 = arith.mulf %172, %171 : vector<2x256xf32>
    %c4_85 = arith.constant 4 : index
    %c1_86 = arith.constant 1 : index
    %174 = memref.load %arg1[%c4_85, %c1_86] : memref<8x4xf32, #tpu.memory_space<smem>>
    %175 = vector.extract_strided_slice %49 {offsets = [0, 256], sizes = [2, 256], strides = [1, 1]} : vector<2x1024xf32> to vector<2x256xf32>
    %176 = vector.broadcast %174 : f32 to vector<2x256xf32>
    %177 = arith.mulf %176, %175 : vector<2x256xf32>
    %178 = arith.addf %173, %177 : vector<2x256xf32>
    %c4_87 = arith.constant 4 : index
    %c2_88 = arith.constant 2 : index
    %179 = memref.load %arg1[%c4_87, %c2_88] : memref<8x4xf32, #tpu.memory_space<smem>>
    %180 = vector.extract_strided_slice %49 {offsets = [0, 512], sizes = [2, 256], strides = [1, 1]} : vector<2x1024xf32> to vector<2x256xf32>
    %181 = vector.broadcast %179 : f32 to vector<2x256xf32>
    %182 = arith.mulf %181, %180 : vector<2x256xf32>
    %183 = arith.addf %178, %182 : vector<2x256xf32>
    %c4_89 = arith.constant 4 : index
    %c3_90 = arith.constant 3 : index
    %184 = memref.load %arg1[%c4_89, %c3_90] : memref<8x4xf32, #tpu.memory_space<smem>>
    %185 = vector.extract_strided_slice %49 {offsets = [0, 768], sizes = [2, 256], strides = [1, 1]} : vector<2x1024xf32> to vector<2x256xf32>
    %186 = vector.broadcast %184 : f32 to vector<2x256xf32>
    %187 = arith.mulf %186, %185 : vector<2x256xf32>
    %188 = arith.addf %183, %187 : vector<2x256xf32>
    %cst_91 = arith.constant 0.000000e+00 : f32
    %189 = vector.broadcast %cst_91 : f32 to vector<2x256xf32>
    %190 = arith.maximumf %188, %189 : vector<2x256xf32>
    %c4_92 = arith.constant 4 : index
    %191 = memref.load %arg2[%c4_92] : memref<8xf32, #tpu.memory_space<smem>>
    %192 = vector.broadcast %191 : f32 to vector<2x256xf32>
    %193 = arith.mulf %190, %192 : vector<2x256xf32>
    %c4_93 = arith.constant 4 : index
    %194 = memref.load %arg3[%c4_93] : memref<8xf32, #tpu.memory_space<smem>>
    %195 = vector.broadcast %194 : f32 to vector<2x256xf32>
    %196 = arith.addf %193, %195 : vector<2x256xf32>
    %c0_94 = arith.constant 0 : index
    %c4_95 = arith.constant 4 : index
    %c0_96 = arith.constant 0 : index
    %197 = vector.load %arg7[%c0_94, %c4_95, %c0_96] : memref<2x8x256xf32, #tpu.memory_space<vmem>>, vector<2x1x256xf32>
    %198 = vector.shape_cast %197 : vector<2x1x256xf32> to vector<2x256xf32>
    %199 = vector.shape_cast %196 : vector<2x256xf32> to vector<2x1x256xf32>
    tpu.vector_store %arg7[%c0_94, %c4_95, %c0_96], %199 {strides = array<i32>} : memref<2x8x256xf32, #tpu.memory_space<vmem>>, vector<2x1x256xf32>,
    %c5 = arith.constant 5 : index
    %c0_97 = arith.constant 0 : index
    %200 = memref.load %arg1[%c5, %c0_97] : memref<8x4xf32, #tpu.memory_space<smem>>
    %201 = vector.extract_strided_slice %49 {offsets = [0, 0], sizes = [2, 256], strides = [1, 1]} : vector<2x1024xf32> to vector<2x256xf32>
    %202 = vector.broadcast %200 : f32 to vector<2x256xf32>
    %203 = arith.mulf %202, %201 : vector<2x256xf32>
    %c5_98 = arith.constant 5 : index
    %c1_99 = arith.constant 1 : index
    %204 = memref.load %arg1[%c5_98, %c1_99] : memref<8x4xf32, #tpu.memory_space<smem>>
    %205 = vector.extract_strided_slice %49 {offsets = [0, 256], sizes = [2, 256], strides = [1, 1]} : vector<2x1024xf32> to vector<2x256xf32>
    %206 = vector.broadcast %204 : f32 to vector<2x256xf32>
    %207 = arith.mulf %206, %205 : vector<2x256xf32>
    %208 = arith.addf %203, %207 : vector<2x256xf32>
    %c5_100 = arith.constant 5 : index
    %c2_101 = arith.constant 2 : index
    %209 = memref.load %arg1[%c5_100, %c2_101] : memref<8x4xf32, #tpu.memory_space<smem>>
    %210 = vector.extract_strided_slice %49 {offsets = [0, 512], sizes = [2, 256], strides = [1, 1]} : vector<2x1024xf32> to vector<2x256xf32>
    %211 = vector.broadcast %209 : f32 to vector<2x256xf32>
    %212 = arith.mulf %211, %210 : vector<2x256xf32>
    %213 = arith.addf %208, %212 : vector<2x256xf32>
    %c5_102 = arith.constant 5 : index
    %c3_103 = arith.constant 3 : index
    %214 = memref.load %arg1[%c5_102, %c3_103] : memref<8x4xf32, #tpu.memory_space<smem>>
    %215 = vector.extract_strided_slice %49 {offsets = [0, 768], sizes = [2, 256], strides = [1, 1]} : vector<2x1024xf32> to vector<2x256xf32>
    %216 = vector.broadcast %214 : f32 to vector<2x256xf32>
    %217 = arith.mulf %216, %215 : vector<2x256xf32>
    %218 = arith.addf %213, %217 : vector<2x256xf32>
    %cst_104 = arith.constant 0.000000e+00 : f32
    %219 = vector.broadcast %cst_104 : f32 to vector<2x256xf32>
    %220 = arith.maximumf %218, %219 : vector<2x256xf32>
    %c5_105 = arith.constant 5 : index
    %221 = memref.load %arg2[%c5_105] : memref<8xf32, #tpu.memory_space<smem>>
    %222 = vector.broadcast %221 : f32 to vector<2x256xf32>
    %223 = arith.mulf %220, %222 : vector<2x256xf32>
    %c5_106 = arith.constant 5 : index
    %224 = memref.load %arg3[%c5_106] : memref<8xf32, #tpu.memory_space<smem>>
    %225 = vector.broadcast %224 : f32 to vector<2x256xf32>
    %226 = arith.addf %223, %225 : vector<2x256xf32>
    %c0_107 = arith.constant 0 : index
    %c5_108 = arith.constant 5 : index
    %c0_109 = arith.constant 0 : index
    %227 = vector.load %arg7[%c0_107, %c5_108, %c0_109] : memref<2x8x256xf32, #tpu.memory_space<vmem>>, vector<2x1x256xf32>
    %228 = vector.shape_cast %227 : vector<2x1x256xf32> to vector<2x256xf32>
    %229 = vector.shape_cast %226 : vector<2x256xf32> to vector<2x1x256xf32>
    tpu.vector_store %arg7[%c0_107, %c5_108, %c0_109], %229 {strides = array<i32>} : memref<2x8x256xf32, #tpu.memory_space<vmem>>, vector<2x1x256xf32>,
    %c6 = arith.constant 6 : index
    %c0_110 = arith.constant 0 : index
    %230 = memref.load %arg1[%c6, %c0_110] : memref<8x4xf32, #tpu.memory_space<smem>>
    %231 = vector.extract_strided_slice %49 {offsets = [0, 0], sizes = [2, 256], strides = [1, 1]} : vector<2x1024xf32> to vector<2x256xf32>
    %232 = vector.broadcast %230 : f32 to vector<2x256xf32>
    %233 = arith.mulf %232, %231 : vector<2x256xf32>
    %c6_111 = arith.constant 6 : index
    %c1_112 = arith.constant 1 : index
    %234 = memref.load %arg1[%c6_111, %c1_112] : memref<8x4xf32, #tpu.memory_space<smem>>
    %235 = vector.extract_strided_slice %49 {offsets = [0, 256], sizes = [2, 256], strides = [1, 1]} : vector<2x1024xf32> to vector<2x256xf32>
    %236 = vector.broadcast %234 : f32 to vector<2x256xf32>
    %237 = arith.mulf %236, %235 : vector<2x256xf32>
    %238 = arith.addf %233, %237 : vector<2x256xf32>
    %c6_113 = arith.constant 6 : index
    %c2_114 = arith.constant 2 : index
    %239 = memref.load %arg1[%c6_113, %c2_114] : memref<8x4xf32, #tpu.memory_space<smem>>
    %240 = vector.extract_strided_slice %49 {offsets = [0, 512], sizes = [2, 256], strides = [1, 1]} : vector<2x1024xf32> to vector<2x256xf32>
    %241 = vector.broadcast %239 : f32 to vector<2x256xf32>
    %242 = arith.mulf %241, %240 : vector<2x256xf32>
    %243 = arith.addf %238, %242 : vector<2x256xf32>
    %c6_115 = arith.constant 6 : index
    %c3_116 = arith.constant 3 : index
    %244 = memref.load %arg1[%c6_115, %c3_116] : memref<8x4xf32, #tpu.memory_space<smem>>
    %245 = vector.extract_strided_slice %49 {offsets = [0, 768], sizes = [2, 256], strides = [1, 1]} : vector<2x1024xf32> to vector<2x256xf32>
    %246 = vector.broadcast %244 : f32 to vector<2x256xf32>
    %247 = arith.mulf %246, %245 : vector<2x256xf32>
    %248 = arith.addf %243, %247 : vector<2x256xf32>
    %cst_117 = arith.constant 0.000000e+00 : f32
    %249 = vector.broadcast %cst_117 : f32 to vector<2x256xf32>
    %250 = arith.maximumf %248, %249 : vector<2x256xf32>
    %c6_118 = arith.constant 6 : index
    %251 = memref.load %arg2[%c6_118] : memref<8xf32, #tpu.memory_space<smem>>
    %252 = vector.broadcast %251 : f32 to vector<2x256xf32>
    %253 = arith.mulf %250, %252 : vector<2x256xf32>
    %c6_119 = arith.constant 6 : index
    %254 = memref.load %arg3[%c6_119] : memref<8xf32, #tpu.memory_space<smem>>
    %255 = vector.broadcast %254 : f32 to vector<2x256xf32>
    %256 = arith.addf %253, %255 : vector<2x256xf32>
    %c0_120 = arith.constant 0 : index
    %c6_121 = arith.constant 6 : index
    %c0_122 = arith.constant 0 : index
    %257 = vector.load %arg7[%c0_120, %c6_121, %c0_122] : memref<2x8x256xf32, #tpu.memory_space<vmem>>, vector<2x1x256xf32>
    %258 = vector.shape_cast %257 : vector<2x1x256xf32> to vector<2x256xf32>
    %259 = vector.shape_cast %256 : vector<2x256xf32> to vector<2x1x256xf32>
    tpu.vector_store %arg7[%c0_120, %c6_121, %c0_122], %259 {strides = array<i32>} : memref<2x8x256xf32, #tpu.memory_space<vmem>>, vector<2x1x256xf32>,
    %c7 = arith.constant 7 : index
    %c0_123 = arith.constant 0 : index
    %260 = memref.load %arg1[%c7, %c0_123] : memref<8x4xf32, #tpu.memory_space<smem>>
    %261 = vector.extract_strided_slice %49 {offsets = [0, 0], sizes = [2, 256], strides = [1, 1]} : vector<2x1024xf32> to vector<2x256xf32>
    %262 = vector.broadcast %260 : f32 to vector<2x256xf32>
    %263 = arith.mulf %262, %261 : vector<2x256xf32>
    %c7_124 = arith.constant 7 : index
    %c1_125 = arith.constant 1 : index
    %264 = memref.load %arg1[%c7_124, %c1_125] : memref<8x4xf32, #tpu.memory_space<smem>>
    %265 = vector.extract_strided_slice %49 {offsets = [0, 256], sizes = [2, 256], strides = [1, 1]} : vector<2x1024xf32> to vector<2x256xf32>
    %266 = vector.broadcast %264 : f32 to vector<2x256xf32>
    %267 = arith.mulf %266, %265 : vector<2x256xf32>
    %268 = arith.addf %263, %267 : vector<2x256xf32>
    %c7_126 = arith.constant 7 : index
    %c2_127 = arith.constant 2 : index
    %269 = memref.load %arg1[%c7_126, %c2_127] : memref<8x4xf32, #tpu.memory_space<smem>>
    %270 = vector.extract_strided_slice %49 {offsets = [0, 512], sizes = [2, 256], strides = [1, 1]} : vector<2x1024xf32> to vector<2x256xf32>
    %271 = vector.broadcast %269 : f32 to vector<2x256xf32>
    %272 = arith.mulf %271, %270 : vector<2x256xf32>
    %273 = arith.addf %268, %272 : vector<2x256xf32>
    %c7_128 = arith.constant 7 : index
    %c3_129 = arith.constant 3 : index
    %274 = memref.load %arg1[%c7_128, %c3_129] : memref<8x4xf32, #tpu.memory_space<smem>>
    %275 = vector.extract_strided_slice %49 {offsets = [0, 768], sizes = [2, 256], strides = [1, 1]} : vector<2x1024xf32> to vector<2x256xf32>
    %276 = vector.broadcast %274 : f32 to vector<2x256xf32>
    %277 = arith.mulf %276, %275 : vector<2x256xf32>
    %278 = arith.addf %273, %277 : vector<2x256xf32>
    %cst_130 = arith.constant 0.000000e+00 : f32
    %279 = vector.broadcast %cst_130 : f32 to vector<2x256xf32>
    %280 = arith.maximumf %278, %279 : vector<2x256xf32>
    %c7_131 = arith.constant 7 : index
    %281 = memref.load %arg2[%c7_131] : memref<8xf32, #tpu.memory_space<smem>>
    %282 = vector.broadcast %281 : f32 to vector<2x256xf32>
    %283 = arith.mulf %280, %282 : vector<2x256xf32>
    %c7_132 = arith.constant 7 : index
    %284 = memref.load %arg3[%c7_132] : memref<8xf32, #tpu.memory_space<smem>>
    %285 = vector.broadcast %284 : f32 to vector<2x256xf32>
    %286 = arith.addf %283, %285 : vector<2x256xf32>
    %c0_133 = arith.constant 0 : index
    %c7_134 = arith.constant 7 : index
    %c0_135 = arith.constant 0 : index
    %287 = vector.load %arg7[%c0_133, %c7_134, %c0_135] : memref<2x8x256xf32, #tpu.memory_space<vmem>>, vector<2x1x256xf32>
    %288 = vector.shape_cast %287 : vector<2x1x256xf32> to vector<2x256xf32>
    %289 = vector.shape_cast %286 : vector<2x256xf32> to vector<2x1x256xf32>
    tpu.vector_store %arg7[%c0_133, %c7_134, %c0_135], %289 {strides = array<i32>} : memref<2x8x256xf32, #tpu.memory_space<vmem>>, vector<2x1x256xf32>,
    return
  }
}

</mosaic_0001>

<llo_original>
// kernel: tpu_custom_call.1
$region0: #{tpu_custom_call.1}
  #allocation0 [shape = 'u32[]', space=smem, size = 0x4, offset = 0x4, fixed_abs, tag = 'smem constant byte address 0x4 - core index']
  #allocation1 [shape = 'u32[144,128]{1,0:T(1,128)}', space=vmem, size = 0x12000, scoped, tag = 'internal scratch']
  %s0 = inlined_call_operand.hbm [shape: f32[3,3], index: 0, kind: input, shape index: {}]
  %s1 = inlined_call_operand.vmem [shape: f32[8,4], index: 1, kind: input, shape index: {}]
  %s2 = inlined_call_operand.vmem [shape: f32[8], index: 2, kind: input, shape index: {}]
  %s3 = inlined_call_operand.vmem [shape: f32[8], index: 3, kind: input, shape index: {}]
  %s4 = inlined_call_operand.vmem [shape: f32[2,1160], index: 4, kind: input, shape index: {}]
  %s5 = inlined_call_operand.vmem [shape: f32[1,1024], index: 5, kind: input, shape index: {}]
  %s6 = inlined_call_operand.hbm [shape: f32[1,1024], index: 6, kind: input, shape index: {}]
  %s7 = inlined_call_operand.hbm [shape: f32[2,8,256], index: 7, kind: output, shape index: {}]
  %s8 = sld [smem:[#allocation0]]
  $region58: #{tpu_custom_call.1} parent=0
    _
  %s10 = ssub.s32 1, %s8
  %s11 = scalar_select 0, %s10, %s8
  $region1: #{tpu_custom_call.1} parent=0
    #allocation2 [shape = 'u8[2048]{0}', space=smem, size = 0x800, scoped, tag = 'input window, operand 0, single buffered']
    #allocation3 [shape = 's32[1]{0}', space=sflag, size = 0x4, scoped, tag = 'scoped memory for tpu_custom_call.1']
    #allocation4 [shape = 's32[1]{0}', space=sflag, size = 0x4, scoped, tag = 'scoped memory for tpu_custom_call.1']
    #allocation5 [shape = 's32[1]{0}', space=sflag, size = 0x4, scoped, tag = 'scoped memory for tpu_custom_call.1']
    #allocation6 [shape = 's32[1]{0}', space=sflag, size = 0x4, scoped, tag = 'scoped memory for tpu_custom_call.1']
    #allocation7 [shape = 'u8[4096]{0}', space=smem, size = 0x1000, scoped, tag = 'input window, operand 1, single buffered']
    #allocation8 [shape = 'u8[512]{0}', space=smem, size = 0x200, scoped, tag = 'input window, operand 2, single buffered']
    #allocation9 [shape = 's32[1]{0}', space=sflag, size = 0x4, scoped, tag = 'scoped memory for tpu_custom_call.1']
    #allocation10 [shape = 'u8[512]{0}', space=smem, size = 0x200, scoped, tag = 'input window, operand 3, single buffered']
    #allocation11 [shape = 'u8[4096]{0}', space=vmem, size = 0x1000, scoped, tag = 'input window, operand 6, single buffered']
    #allocation12 [shape = 'u8[16384]{0}', space=vmem, size = 0x4000, scoped, tag = 'output window, operand 0, single buffered']
    %12 = vsyncpa [#allocation5], 0
    %13 = vsyncpa [#allocation6], 0
    %14 = vsyncpa [#allocation9], 0
    %15 = vsyncpa [#allocation3], 0
    %16 = vsyncpa [#allocation4], 0
    // Predicated region
    $region2: #{tpu_custom_call.1} parent=1 // pred_check
      _
    $region3: #{tpu_custom_call.1} parent=1 // pred_check_branch
      %18 = sbr.rel (0) target = $region5
    $region4: #{tpu_custom_call.1} parent=1 // pred_region
      %s20 = ssub.s32 64, 64
      %21 = vsyncadd [#allocation5], %s20
      %24 = dma.hbm_to_smem %s0, 64, [#allocation2], [#allocation5]
    $region5: #{tpu_custom_call.1} parent=1 // pred_fallthru
      _
    // Predicated region
    $region6: #{tpu_custom_call.1} parent=1 // pred_check
      _
    $region7: #{tpu_custom_call.1} parent=1 // pred_check_branch
      %26 = sbr.rel (0) target = $region9
    $region8: #{tpu_custom_call.1} parent=1 // pred_region
      %s28 = ssub.s32 128, 128
      %29 = vsyncadd [#allocation6], %s28
      %s31 = sshll.u32 %s1, 4
      %s32 = int_to_ptr.vmem [resolvable:$true] %s31
      %34 = dma.vmem_to_smem %s32, 128, [#allocation7], [#allocation6]
    $region9: #{tpu_custom_call.1} parent=1 // pred_fallthru
      _
    // Predicated region
    $region10: #{tpu_custom_call.1} parent=1 // pred_check
      _
    $region11: #{tpu_custom_call.1} parent=1 // pred_check_branch
      %36 = sbr.rel (0) target = $region13
    $region12: #{tpu_custom_call.1} parent=1 // pred_region
      %s38 = ssub.s32 16, 16
      %39 = vsyncadd [#allocation9], %s38
      %s41 = sshll.u32 %s2, 4
      %s42 = int_to_ptr.vmem [resolvable:$true] %s41
      %44 = dma.vmem_to_smem %s42, 16, [#allocation8], [#allocation9]
    $region13: #{tpu_custom_call.1} parent=1 // pred_fallthru
      _
    // Predicated region
    $region14: #{tpu_custom_call.1} parent=1 // pred_check
      _
    $region15: #{tpu_custom_call.1} parent=1 // pred_check_branch
      %46 = sbr.rel (0) target = $region17
    $region16: #{tpu_custom_call.1} parent=1 // pred_region
      %s48 = ssub.s32 16, 16
      %49 = vsyncadd [#allocation9], %s48
      %s51 = sshll.u32 %s3, 4
      %s52 = int_to_ptr.vmem [resolvable:$true] %s51
      %54 = dma.vmem_to_smem %s52, 16, [#allocation10], [#allocation9]
    $region17: #{tpu_custom_call.1} parent=1 // pred_fallthru
      _
    // Predicated region
    $region18: #{tpu_custom_call.1} parent=1 // pred_check
      _
    $region19: #{tpu_custom_call.1} parent=1 // pred_check_branch
      %56 = sbr.rel (0) target = $region21
    $region20: #{tpu_custom_call.1} parent=1 // pred_region
      _
    $region21: #{tpu_custom_call.1} parent=1 // pred_fallthru
      _
    // Predicated region
    $region22: #{tpu_custom_call.1} parent=1 // pred_check
      _
    $region23: #{tpu_custom_call.1} parent=1 // pred_check_branch
      %58 = sbr.rel (0) target = $region25
    $region24: #{tpu_custom_call.1} parent=1 // pred_region
      _
    $region25: #{tpu_custom_call.1} parent=1 // pred_fallthru
      _
    // Predicated region
    $region26: #{tpu_custom_call.1} parent=1 // pred_check
      _
    $region27: #{tpu_custom_call.1} parent=1 // pred_check_branch
      %60 = sbr.rel (0) target = $region29
    $region28: #{tpu_custom_call.1} parent=1 // pred_region
      %s62 = ssub.s32 128, 128
      %63 = vsyncadd [#allocation3], %s62
      %s65 = sshll.u32 [#allocation11], 4
      %s66 = int_to_ptr.vmem [resolvable:$true] %s65
      %68 = dma.hbm_to_vmem [thread:$0]  %s6, 128, %s66, [#allocation3]
    $region29: #{tpu_custom_call.1} parent=1 // pred_fallthru
      _
    // Predicated region
    $region30: #{tpu_custom_call.1} parent=1 // pred_check
      _
    $region31: #{tpu_custom_call.1} parent=1 // pred_check_branch
      %70 = sbr.rel (0) target = $region33
    $region32: #{tpu_custom_call.1} parent=1 // pred_region
      %71 = dma.done [#allocation5], 64
    $region33: #{tpu_custom_call.1} parent=1 // pred_fallthru
      _
    // Predicated region
    $region34: #{tpu_custom_call.1} parent=1 // pred_check
      _
    $region35: #{tpu_custom_call.1} parent=1 // pred_check_branch
      %73 = sbr.rel (0) target = $region37
    $region36: #{tpu_custom_call.1} parent=1 // pred_region
      %74 = dma.done [#allocation6], 128
    $region37: #{tpu_custom_call.1} parent=1 // pred_fallthru
      _
    // Predicated region
    $region38: #{tpu_custom_call.1} parent=1 // pred_check
      _
    $region39: #{tpu_custom_call.1} parent=1 // pred_check_branch
      %76 = sbr.rel (0) target = $region41
    $region40: #{tpu_custom_call.1} parent=1 // pred_region
      %77 = dma.done [#allocation9], 16
    $region41: #{tpu_custom_call.1} parent=1 // pred_fallthru
      _
    // Predicated region
    $region42: #{tpu_custom_call.1} parent=1 // pred_check
      _
    $region43: #{tpu_custom_call.1} parent=1 // pred_check_branch
      %79 = sbr.rel (0) target = $region45
    $region44: #{tpu_custom_call.1} parent=1 // pred_region
      %80 = dma.done [#allocation9], 16
    $region45: #{tpu_custom_call.1} parent=1 // pred_fallthru
      _
    // Predicated region
    $region46: #{tpu_custom_call.1} parent=1 // pred_check
      _
    $region47: #{tpu_custom_call.1} parent=1 // pred_check_branch
      %82 = sbr.rel (0) target = $region49
    $region48: #{tpu_custom_call.1} parent=1 // pred_region
      %83 = dma.done [#allocation3], 128
    $region49: #{tpu_custom_call.1} parent=1 // pred_fallthru
      _
    %84 = sfence
    %s85 = sld [smem:[#allocation2 + $0x1]]
    %v86 = vld [vmem:[%s4] sm:$0xff]
    %v87 = vld [vmem:[%s4 + $0x8] sm:$0xff]
    %v88 = vld [vmem:[%s4 + $0x10] sm:$0x3]
    %v89 = vstv %s85
    %v90 = vmul.f32 %v89, %v86
    %v91 = vmul.f32 %v89, %v87
    %v92 = vmul.f32 %v89, %v88
    %s93 = sld [smem:[#allocation2 + $0x81]]
    %v94 = vstv %s93
    %v95 = vmul.f32 %v94, %v86
    %v96 = vmul.f32 %v94, %v87
    %v97 = vmul.f32 %v94, %v88
    %101 = vrot.lane.b32.xlu0 %v95, 64
    %v102 = vpop.permute.xlu0 %101
    %103 = vrot.lane.b32.xlu0 %v96, 64
    %v104 = vpop.permute.xlu0 %103
    %105 = vrot.lane.b32.xlu0 %v97, 64
    %v106 = vpop.permute.xlu0 %105
    %v107 = vrot.slane %v102, 2
    %v108 = vrot.slane %v104, 2
    %v109 = vrot.slane %v106, 2
    %vm110 = vcmask 1045504
    %v111 = vsel %vm110, %v107, %v108
    %vm112 = vcmask 523264
    %v113 = vsel %vm112, %v102, %v111
    %v114 = vsel %vm110, %v108, %v109
    %v115 = vsel %vm112, %v104, %v114
    %v119 = vadd.f32 %v90, %v113
    %v120 = vadd.f32 %v91, %v115
    %v121 = vadd.f32 %v92, %v106
    %s122 = sld [smem:[#allocation2 + $0x101]]
    %v123 = vld [vmem:[%s4 + $0x2] sm:$0xff]
    %v124 = vld [vmem:[%s4 + $0xa] sm:$0xff]
    %v125 = vld [vmem:[%s4 + $0x12] sm:$0x3]
    %v126 = vstv %s122
    %v127 = vmul.f32 %v126, %v123
    %v128 = vmul.f32 %v126, %v124
    %v129 = vmul.f32 %v126, %v125
    %v130 = vadd.f32 %v119, %v127
    %v131 = vadd.f32 %v120, %v128
    %v132 = vadd.f32 %v121, %v129
    %s133 = sld [smem:[#allocation2]]
    %v134 = vld [vmem:[%s4] sm:$0xff]
    %v135 = vld [vmem:[%s4 + $0x8] sm:$0xff]
    %v136 = vstv %s133
    %v137 = vmul.f32 %v136, %v134
    %v138 = vmul.f32 %v136, %v135
    %s139 = sld [smem:[#allocation2 + $0x80]]
    %v140 = vstv %s139
    %v141 = vmul.f32 %v140, %v86
    %v142 = vmul.f32 %v140, %v87
    %v143 = vmul.f32 %v140, %v88
    %147 = vrot.lane.b32.xlu0 %v141, 64
    %v148 = vpop.permute.xlu0 %147
    %149 = vrot.lane.b32.xlu0 %v142, 64
    %v150 = vpop.permute.xlu0 %149
    %151 = vrot.lane.b32.xlu0 %v143, 64
    %v152 = vpop.permute.xlu0 %151
    %v153 = vrot.slane %v148, 2
    %v154 = vrot.slane %v150, 2
    %v155 = vrot.slane %v152, 2
    %v156 = vsel %vm110, %v153, %v154
    %v157 = vsel %vm112, %v148, %v156
    %v158 = vsel %vm110, %v154, %v155
    %v159 = vsel %vm112, %v150, %v158
    %v162 = vadd.f32 %v137, %v157
    %v163 = vadd.f32 %v138, %v159
    %s164 = sld [smem:[#allocation2 + $0x100]]
    %v165 = vld [vmem:[%s4 + $0x2] sm:$0xff]
    %v166 = vld [vmem:[%s4 + $0xa] sm:$0xff]
    %v167 = vstv %s164
    %v168 = vmul.f32 %v167, %v165
    %v169 = vmul.f32 %v167, %v166
    %v170 = vadd.f32 %v162, %v168
    %v171 = vadd.f32 %v163, %v169
    %s172 = sld [smem:[#allocation2 + $0x2]]
    %v173 = vstv %s172
    %v174 = vmul.f32 %v173, %v86
    %v175 = vmul.f32 %v173, %v87
    %v176 = vmul.f32 %v173, %v88
    %s177 = sld [smem:[#allocation2 + $0x82]]
    %v178 = vstv %s177
    %v179 = vmul.f32 %v178, %v86
    %v180 = vmul.f32 %v178, %v87
    %v181 = vmul.f32 %v178, %v88
    %185 = vrot.lane.b32.xlu0 %v179, 64
    %v186 = vpop.permute.xlu0 %185
    %187 = vrot.lane.b32.xlu0 %v180, 64
    %v188 = vpop.permute.xlu0 %187
    %189 = vrot.lane.b32.xlu0 %v181, 64
    %v190 = vpop.permute.xlu0 %189
    %v191 = vrot.slane %v186, 2
    %v192 = vrot.slane %v188, 2
    %v193 = vrot.slane %v190, 2
    %v194 = vsel %vm110, %v191, %v192
    %v195 = vsel %vm112, %v186, %v194
    %v196 = vsel %vm110, %v192, %v193
    %v197 = vsel %vm112, %v188, %v196
    %v201 = vadd.f32 %v174, %v195
    %v202 = vadd.f32 %v175, %v197
    %v203 = vadd.f32 %v176, %v190
    %s204 = sld [smem:[#allocation2 + $0x102]]
    %v205 = vstv %s204
    %v206 = vmul.f32 %v205, %v123
    %v207 = vmul.f32 %v205, %v124
    %v208 = vmul.f32 %v205, %v125
    %v209 = vadd.f32 %v201, %v206
    %v210 = vadd.f32 %v202, %v207
    %v211 = vadd.f32 %v203, %v208
    %v212 = vld [vmem:[%s5] sm:$0xff]
    %v214 = vlaneseq
    %v215 = vshrl.u32 %v214, 7
    %v216 = vsub.s32 0, %v215
    %v217 = vrot.slane %v212, %v216
    %v218 = vlaneseq
    %v219 = vshrl.u32 %v218, 7
    %v220 = vsub.s32 1, %v219
    %v221 = vrot.slane %v212, %v220
    %v222 = vlaneseq
    %v223 = vshrl.u32 %v222, 7
    %v224 = vsub.s32 2, %v223
    %v225 = vrot.slane %v212, %v224
    %v226 = vlaneseq
    %v227 = vshrl.u32 %v226, 7
    %v228 = vsub.s32 3, %v227
    %v229 = vrot.slane %v212, %v228
    %v230 = vlaneseq
    %v231 = vshrl.u32 %v230, 7
    %v232 = vsub.s32 4, %v231
    %v233 = vrot.slane %v212, %v232
    %v234 = vlaneseq
    %v235 = vshrl.u32 %v234, 7
    %v236 = vsub.s32 5, %v235
    %v237 = vrot.slane %v212, %v236
    %v238 = vlaneseq
    %v239 = vshrl.u32 %v238, 7
    %v240 = vsub.s32 6, %v239
    %v241 = vrot.slane %v212, %v240
    %v242 = vlaneseq
    %v243 = vshrl.u32 %v242, 7
    %v244 = vsub.s32 7, %v243
    %v245 = vrot.slane %v212, %v244
    %v246 = vcombine.low %v217, %v221
    %v247 = vcombine.low %v225, %v229
    %v249 = vunpack.c.l.s4 1983009808
    %v250 = vunpack.c.0.s8 %v249
    %v251 = vlaneseq
    %v252 = vshrl.u32 %v251, 7
    %v253 = vsub.s32 %v250, %v252
    %v254 = vrot.slane %v246, %v253
    %v256 = vunpack.c.l.s4 1983009808
    %v257 = vunpack.c.0.s8 %v256
    %v258 = vlaneseq
    %v259 = vshrl.u32 %v258, 7
    %v260 = vsub.s32 %v257, %v259
    %v261 = vrot.slane %v247, %v260
    %v262 = vcombine.low %v254, %v261
    %v263 = vcombine.low %v233, %v237
    %v264 = vcombine.low %v241, %v245
    %v266 = vunpack.c.l.s4 1983009808
    %v267 = vunpack.c.0.s8 %v266
    %v268 = vlaneseq
    %v269 = vshrl.u32 %v268, 7
    %v270 = vsub.s32 %v267, %v269
    %v271 = vrot.slane %v263, %v270
    %v273 = vunpack.c.l.s4 1983009808
    %v274 = vunpack.c.0.s8 %v273
    %v275 = vlaneseq
    %v276 = vshrl.u32 %v275, 7
    %v277 = vsub.s32 %v274, %v276
    %v278 = vrot.slane %v264, %v277
    %v279 = vcombine.low %v271, %v278
    %v282 = vmul.f32 %v170, %v262
    %v283 = vmul.f32 %v171, %v279
    %286 = vrot.lane.b32.xlu0 %v282, 4
    %v287 = vpop.permute.xlu0 %286
    %288 = vrot.lane.b32.xlu0 %v283, 4
    %v289 = vpop.permute.xlu0 %288
    %v290 = vrot.slane %v287, 6
    %v291 = vrot.slane %v289, 6
    %vm292 = vcmask 31744
    %v293 = vsel %vm292, %v290, %v287
    %vm294 = vcmask 1041408
    %v295 = vsel %vm294, %v290, %v291
    %v296 = vsel %vm292, %v295, %v289
    %v300 = vadd.f32 %v130, %v293
    %v301 = vadd.f32 %v131, %v296
    %v302 = vadd.f32 %v132, %v291
    %v303 = vld [vmem:[#allocation11] sm:$0xff]
    %v305 = vlaneseq
    %v306 = vshrl.u32 %v305, 7
    %v307 = vsub.s32 0, %v306
    %v308 = vrot.slane %v303, %v307
    %v309 = vlaneseq
    %v310 = vshrl.u32 %v309, 7
    %v311 = vsub.s32 1, %v310
    %v312 = vrot.slane %v303, %v311
    %v313 = vlaneseq
    %v314 = vshrl.u32 %v313, 7
    %v315 = vsub.s32 2, %v314
    %v316 = vrot.slane %v303, %v315
    %v317 = vlaneseq
    %v318 = vshrl.u32 %v317, 7
    %v319 = vsub.s32 3, %v318
    %v320 = vrot.slane %v303, %v319
    %v321 = vlaneseq
    %v322 = vshrl.u32 %v321, 7
    %v323 = vsub.s32 4, %v322
    %v324 = vrot.slane %v303, %v323
    %v325 = vlaneseq
    %v326 = vshrl.u32 %v325, 7
    %v327 = vsub.s32 5, %v326
    %v328 = vrot.slane %v303, %v327
    %v329 = vlaneseq
    %v330 = vshrl.u32 %v329, 7
    %v331 = vsub.s32 6, %v330
    %v332 = vrot.slane %v303, %v331
    %v333 = vlaneseq
    %v334 = vshrl.u32 %v333, 7
    %v335 = vsub.s32 7, %v334
    %v336 = vrot.slane %v303, %v335
    %v337 = vcombine.low %v308, %v312
    %v338 = vcombine.low %v316, %v320
    %v340 = vunpack.c.l.s4 1983009808
    %v341 = vunpack.c.0.s8 %v340
    %v342 = vlaneseq
    %v343 = vshrl.u32 %v342, 7
    %v344 = vsub.s32 %v341, %v343
    %v345 = vrot.slane %v337, %v344
    %v347 = vunpack.c.l.s4 1983009808
    %v348 = vunpack.c.0.s8 %v347
    %v349 = vlaneseq
    %v350 = vshrl.u32 %v349, 7
    %v351 = vsub.s32 %v348, %v350
    %v352 = vrot.slane %v338, %v351
    %v353 = vcombine.low %v345, %v352
    %v354 = vcombine.low %v324, %v328
    %v355 = vcombine.low %v332, %v336
    %v357 = vunpack.c.l.s4 1983009808
    %v358 = vunpack.c.0.s8 %v357
    %v359 = vlaneseq
    %v360 = vshrl.u32 %v359, 7
    %v361 = vsub.s32 %v358, %v360
    %v362 = vrot.slane %v354, %v361
    %v364 = vunpack.c.l.s4 1983009808
    %v365 = vunpack.c.0.s8 %v364
    %v366 = vlaneseq
    %v367 = vshrl.u32 %v366, 7
    %v368 = vsub.s32 %v365, %v367
    %v369 = vrot.slane %v355, %v368
    %v370 = vcombine.low %v362, %v369
    %371 = vrot.lane.b32.xlu0 %v353, 8
    %v372 = vpop.permute.xlu0 %371
    %373 = vrot.lane.b32.xlu0 %v370, 8
    %v374 = vpop.permute.xlu0 %373
    %v375 = vrot.slane %v372, 6
    %v376 = vrot.slane %v374, 6
    %vm377 = vcmask 64512
    %v378 = vsel %vm377, %v375, %v372
    %v379 = vsel %vm294, %v375, %v376
    %v380 = vsel %vm377, %v379, %v374
    %v384 = vmul.f32 %v209, %v378
    %v385 = vmul.f32 %v210, %v380
    %v386 = vmul.f32 %v211, %v376
    %390 = vrot.lane.b32.xlu0 %v384, 124
    %v391 = vpop.permute.xlu0 %390
    %392 = vrot.lane.b32.xlu0 %v385, 124
    %v393 = vpop.permute.xlu0 %392
    %394 = vrot.lane.b32.xlu0 %v386, 124
    %v395 = vpop.permute.xlu0 %394
    %v396 = vrot.slane %v391, 2
    %v397 = vrot.slane %v393, 2
    %v398 = vrot.slane %v395, 2
    %v399 = vsel %vm110, %v396, %v397
    %vm400 = vcmask 1014784
    %v401 = vsel %vm400, %v391, %v399
    %v402 = vsel %vm110, %v397, %v398
    %v403 = vsel %vm400, %v393, %v402
    %v407 = vadd.f32 %v300, %v401
    %v408 = vadd.f32 %v301, %v403
    %v409 = vadd.f32 %v302, %v395
    %s410 = sld [smem:[#allocation7]]
    %v411 = vstv %s410
    %v412 = vmul.f32 %v411, %v407
    %s413 = sld [smem:[#allocation7 + $0x1]]
    %v414 = vstv %s413
    %417 = vrot.lane.b32.xlu0 %v407, 124
    %v418 = vpop.permute.xlu0 %417
    %419 = vrot.lane.b32.xlu0 %v408, 124
    %v420 = vpop.permute.xlu0 %419
    %v421 = vrot.slane %v418, 4
    %v422 = vrot.slane %v418, 6
    %v423 = vrot.slane %v420, 6
    %v424 = vsel %vm294, %v422, %v423
    %v425 = vsel %vm400, %v421, %v424
    %v427 = vmul.f32 %v414, %v425
    %429 = vrot.lane.b32.xlu0 %v427, 4
    %v430 = vpop.permute.xlu0 %429
    %v431 = vrot.slane %v430, 6
    %v432 = vsel %vm292, %v431, %v430
    %v434 = vadd.f32 %v412, %v432
    %s435 = sld [smem:[#allocation7 + $0x2]]
    %v436 = vstv %s435
    %v437 = vmul.f32 %v436, %v408
    %v438 = vadd.f32 %v434, %v437
    %s439 = sld [smem:[#allocation7 + $0x3]]
    %v440 = vstv %s439
    %442 = vrot.lane.b32.xlu0 %v409, 124
    %v443 = vpop.permute.xlu0 %442
    %v444 = vrot.slane %v420, 4
    %v445 = vrot.slane %v443, 6
    %v446 = vsel %vm294, %v423, %v445
    %v447 = vsel %vm400, %v444, %v446
    %v449 = vmul.f32 %v440, %v447
    %451 = vrot.lane.b32.xlu0 %v449, 4
    %v452 = vpop.permute.xlu0 %451
    %v453 = vrot.slane %v452, 6
    %v454 = vsel %vm292, %v453, %v452
    %v456 = vadd.f32 %v438, %v454
    %v457 = vmax.f32 %v456, 0.0
    %s458 = sld [smem:[#allocation8]]
    %v459 = vstv %s458
    %v460 = vmul.f32 %v457, %v459
    %s461 = sld [smem:[#allocation10]]
    %v462 = vstv %s461
    %v463 = vadd.f32 %v460, %v462
    %v466 = vunpack.c.l.s4 1966171168
    %v467 = vunpack.c.0.s8 %v466
    %v468 = vlaneseq
    %v469 = vshrl.u32 %v468, 7
    %v470 = vsub.s32 %v467, %v469
    %v471 = vrot.slane %v463, %v470
    %v472 = vcombine.high %v471, %v471
    %473 = vrot.lane.b32.xlu0 %v471, 124
    %v474 = vpop.permute.xlu0 %473
    %475 = vrot.lane.b32.xlu0 %v472, 124
    %v476 = vpop.permute.xlu0 %475
    %v477 = vrot.slane %v474, 1
    %v478 = vrot.slane %v476, 1
    %v479 = vsel %vm400, %v474, %v477
    %v480 = vsel %vm400, %v476, %v478
    %v483 = vlaneseq
    %vm484 = vcmp.ge.s32.totalorder %v483, 0
    %vm485 = vcmp.lt.s32.totalorder %v483, 256
    %vm486 = vmand %vm484, %vm485
    %487 = vst.msk [vmem:[#allocation12] ss:$8 sm:$0x3] %vm486, %v479
    %488 = vst.msk [vmem:[#allocation12] ss:$8 sm:$0x0] %vm486, %v479
    %s489 = scalar_lea.vmem [#allocation12], 16
    %490 = vst.msk [vmem:[%s489] ss:$8 sm:$0x3] %vm486, %v480
    %491 = vst.msk [vmem:[%s489] ss:$8 sm:$0x0] %vm486, %v480
    %s492 = sld [smem:[#allocation7 + $0x80]]
    %v493 = vstv %s492
    %v494 = vmul.f32 %v493, %v407
    %s495 = sld [smem:[#allocation7 + $0x81]]
    %v496 = vstv %s495
    %v497 = vmul.f32 %v496, %v425
    %499 = vrot.lane.b32.xlu0 %v497, 4
    %v500 = vpop.permute.xlu0 %499
    %v501 = vrot.slane %v500, 6
    %v502 = vsel %vm292, %v501, %v500
    %v504 = vadd.f32 %v494, %v502
    %s505 = sld [smem:[#allocation7 + $0x82]]
    %v506 = vstv %s505
    %v507 = vmul.f32 %v506, %v408
    %v508 = vadd.f32 %v504, %v507
    %s509 = sld [smem:[#allocation7 + $0x83]]
    %v510 = vstv %s509
    %v511 = vmul.f32 %v510, %v447
    %513 = vrot.lane.b32.xlu0 %v511, 4
    %v514 = vpop.permute.xlu0 %513
    %v515 = vrot.slane %v514, 6
    %v516 = vsel %vm292, %v515, %v514
    %v518 = vadd.f32 %v508, %v516
    %v519 = vmax.f32 %v518, 0.0
    %s520 = sld [smem:[#allocation8 + $0x1]]
    %v521 = vstv %s520
    %v522 = vmul.f32 %v519, %v521
    %s523 = sld [smem:[#allocation10 + $0x1]]
    %v524 = vstv %s523
    %v525 = vadd.f32 %v522, %v524
    %v528 = vunpack.c.l.s4 1966171168
    %v529 = vunpack.c.0.s8 %v528
    %v530 = vlaneseq
    %v531 = vshrl.u32 %v530, 7
    %v532 = vsub.s32 %v529, %v531
    %v533 = vrot.slane %v525, %v532
    %v534 = vcombine.high %v533, %v533
    %535 = vrot.lane.b32.xlu0 %v533, 124
    %v536 = vpop.permute.xlu0 %535
    %537 = vrot.lane.b32.xlu0 %v534, 124
    %v538 = vpop.permute.xlu0 %537
    %v539 = vrot.slane %v536, 1
    %v540 = vrot.slane %v538, 1
    %v541 = vsel %vm400, %v536, %v539
    %v542 = vsel %vm400, %v538, %v540
    %s545 = scalar_lea.vmem [#allocation12], 1
    %546 = vst.msk [vmem:[%s545] ss:$8 sm:$0x3] %vm486, %v541
    %547 = vst.msk [vmem:[%s545] ss:$8 sm:$0x0] %vm486, %v541
    %s548 = scalar_lea.vmem [#allocation12], 17
    %549 = vst.msk [vmem:[%s548] ss:$8 sm:$0x3] %vm486, %v542
    %550 = vst.msk [vmem:[%s548] ss:$8 sm:$0x0] %vm486, %v542
    %s551 = sld [smem:[#allocation7 + $0x100]]
    %v552 = vstv %s551
    %v553 = vmul.f32 %v552, %v407
    %s554 = sld [smem:[#allocation7 + $0x101]]
    %v555 = vstv %s554
    %v556 = vmul.f32 %v555, %v425
    %558 = vrot.lane.b32.xlu0 %v556, 4
    %v559 = vpop.permute.xlu0 %558
    %v560 = vrot.slane %v559, 6
    %v561 = vsel %vm292, %v560, %v559
    %v563 = vadd.f32 %v553, %v561
    %s564 = sld [smem:[#allocation7 + $0x102]]
    %v565 = vstv %s564
    %v566 = vmul.f32 %v565, %v408
    %v567 = vadd.f32 %v563, %v566
    %s568 = sld [smem:[#allocation7 + $0x103]]
    %v569 = vstv %s568
    %v570 = vmul.f32 %v569, %v447
    %572 = vrot.lane.b32.xlu0 %v570, 4
    %v573 = vpop.permute.xlu0 %572
    %v574 = vrot.slane %v573, 6
    %v575 = vsel %vm292, %v574, %v573
    %v577 = vadd.f32 %v567, %v575
    %v578 = vmax.f32 %v577, 0.0
    %s579 = sld [smem:[#allocation8 + $0x2]]
    %v580 = vstv %s579
    %v581 = vmul.f32 %v578, %v580
    %s582 = sld [smem:[#allocation10 + $0x2]]
    %v583 = vstv %s582
    %v584 = vadd.f32 %v581, %v583
    %v587 = vunpack.c.l.s4 1966171168
    %v588 = vunpack.c.0.s8 %v587
    %v589 = vlaneseq
    %v590 = vshrl.u32 %v589, 7
    %v591 = vsub.s32 %v588, %v590
    %v592 = vrot.slane %v584, %v591
    %v593 = vcombine.high %v592, %v592
    %594 = vrot.lane.b32.xlu0 %v592, 124
    %v595 = vpop.permute.xlu0 %594
    %596 = vrot.lane.b32.xlu0 %v593, 124
    %v597 = vpop.permute.xlu0 %596
    %v598 = vrot.slane %v595, 1
    %v599 = vrot.slane %v597, 1
    %v600 = vsel %vm400, %v595, %v598
    %v601 = vsel %vm400, %v597, %v599
    %s604 = scalar_lea.vmem [#allocation12], 2
    %605 = vst.msk [vmem:[%s604] ss:$8 sm:$0x3] %vm486, %v600
    %606 = vst.msk [vmem:[%s604] ss:$8 sm:$0x0] %vm486, %v600
    %s607 = scalar_lea.vmem [#allocation12], 18
    %608 = vst.msk [vmem:[%s607] ss:$8 sm:$0x3] %vm486, %v601
    %609 = vst.msk [vmem:[%s607] ss:$8 sm:$0x0] %vm486, %v601
    %s610 = sld [smem:[#allocation7 + $0x180]]
    %v611 = vstv %s610
    %v612 = vmul.f32 %v611, %v407
    %s613 = sld [smem:[#allocation7 + $0x181]]
    %v614 = vstv %s613
    %v615 = vmul.f32 %v614, %v425
    %617 = vrot.lane.b32.xlu0 %v615, 4
    %v618 = vpop.permute.xlu0 %617
    %v619 = vrot.slane %v618, 6
    %v620 = vsel %vm292, %v619, %v618
    %v622 = vadd.f32 %v612, %v620
    %s623 = sld [smem:[#allocation7 + $0x182]]
    %v624 = vstv %s623
    %v625 = vmul.f32 %v624, %v408
    %v626 = vadd.f32 %v622, %v625
    %s627 = sld [smem:[#allocation7 + $0x183]]
    %v628 = vstv %s627
    %v629 = vmul.f32 %v628, %v447
    %631 = vrot.lane.b32.xlu0 %v629, 4
    %v632 = vpop.permute.xlu0 %631
    %v633 = vrot.slane %v632, 6
    %v634 = vsel %vm292, %v633, %v632
    %v636 = vadd.f32 %v626, %v634
    %v637 = vmax.f32 %v636, 0.0
    %s638 = sld [smem:[#allocation8 + $0x3]]
    %v639 = vstv %s638
    %v640 = vmul.f32 %v637, %v639
    %s641 = sld [smem:[#allocation10 + $0x3]]
    %v642 = vstv %s641
    %v643 = vadd.f32 %v640, %v642
    %v646 = vunpack.c.l.s4 1966171168
    %v647 = vunpack.c.0.s8 %v646
    %v648 = vlaneseq
    %v649 = vshrl.u32 %v648, 7
    %v650 = vsub.s32 %v647, %v649
    %v651 = vrot.slane %v643, %v650
    %v652 = vcombine.high %v651, %v651
    %653 = vrot.lane.b32.xlu0 %v651, 124
    %v654 = vpop.permute.xlu0 %653
    %655 = vrot.lane.b32.xlu0 %v652, 124
    %v656 = vpop.permute.xlu0 %655
    %v657 = vrot.slane %v654, 1
    %v658 = vrot.slane %v656, 1
    %v659 = vsel %vm400, %v654, %v657
    %v660 = vsel %vm400, %v656, %v658
    %s663 = scalar_lea.vmem [#allocation12], 3
    %664 = vst.msk [vmem:[%s663] ss:$8 sm:$0x3] %vm486, %v659
    %665 = vst.msk [vmem:[%s663] ss:$8 sm:$0x0] %vm486, %v659
    %s666 = scalar_lea.vmem [#allocation12], 19
    %667 = vst.msk [vmem:[%s666] ss:$8 sm:$0x3] %vm486, %v660
    %668 = vst.msk [vmem:[%s666] ss:$8 sm:$0x0] %vm486, %v660
    %s669 = sld [smem:[#allocation7 + $0x200]]
    %v670 = vstv %s669
    %v671 = vmul.f32 %v670, %v407
    %s672 = sld [smem:[#allocation7 + $0x201]]
    %v673 = vstv %s672
    %v674 = vmul.f32 %v673, %v425
    %676 = vrot.lane.b32.xlu0 %v674, 4
    %v677 = vpop.permute.xlu0 %676
    %v678 = vrot.slane %v677, 6
    %v679 = vsel %vm292, %v678, %v677
    %v681 = vadd.f32 %v671, %v679
    %s682 = sld [smem:[#allocation7 + $0x202]]
    %v683 = vstv %s682
    %v684 = vmul.f32 %v683, %v408
    %v685 = vadd.f32 %v681, %v684
    %s686 = sld [smem:[#allocation7 + $0x203]]
    %v687 = vstv %s686
    %v688 = vmul.f32 %v687, %v447
    %690 = vrot.lane.b32.xlu0 %v688, 4
    %v691 = vpop.permute.xlu0 %690
    %v692 = vrot.slane %v691, 6
    %v693 = vsel %vm292, %v692, %v691
    %v695 = vadd.f32 %v685, %v693
    %v696 = vmax.f32 %v695, 0.0
    %s697 = sld [smem:[#allocation8 + $0x4]]
    %v698 = vstv %s697
    %v699 = vmul.f32 %v696, %v698
    %s700 = sld [smem:[#allocation10 + $0x4]]
    %v701 = vstv %s700
    %v702 = vadd.f32 %v699, %v701
    %v705 = vunpack.c.l.s4 1966171168
    %v706 = vunpack.c.0.s8 %v705
    %v707 = vlaneseq
    %v708 = vshrl.u32 %v707, 7
    %v709 = vsub.s32 %v706, %v708
    %v710 = vrot.slane %v702, %v709
    %v711 = vcombine.high %v710, %v710
    %712 = vrot.lane.b32.xlu0 %v710, 124
    %v713 = vpop.permute.xlu0 %712
    %714 = vrot.lane.b32.xlu0 %v711, 124
    %v715 = vpop.permute.xlu0 %714
    %v716 = vrot.slane %v713, 1
    %v717 = vrot.slane %v715, 1
    %v718 = vsel %vm400, %v713, %v716
    %v719 = vsel %vm400, %v715, %v717
    %s722 = scalar_lea.vmem [#allocation12], 4
    %723 = vst.msk [vmem:[%s722] ss:$8 sm:$0x3] %vm486, %v718
    %724 = vst.msk [vmem:[%s722] ss:$8 sm:$0x0] %vm486, %v718
    %s725 = scalar_lea.vmem [#allocation12], 20
    %726 = vst.msk [vmem:[%s725] ss:$8 sm:$0x3] %vm486, %v719
    %727 = vst.msk [vmem:[%s725] ss:$8 sm:$0x0] %vm486, %v719
    %s728 = sld [smem:[#allocation7 + $0x280]]
    %v729 = vstv %s728
    %v730 = vmul.f32 %v729, %v407
    %s731 = sld [smem:[#allocation7 + $0x281]]
    %v732 = vstv %s731
    %v733 = vmul.f32 %v732, %v425
    %735 = vrot.lane.b32.xlu0 %v733, 4
    %v736 = vpop.permute.xlu0 %735
    %v737 = vrot.slane %v736, 6
    %v738 = vsel %vm292, %v737, %v736
    %v740 = vadd.f32 %v730, %v738
    %s741 = sld [smem:[#allocation7 + $0x282]]
    %v742 = vstv %s741
    %v743 = vmul.f32 %v742, %v408
    %v744 = vadd.f32 %v740, %v743
    %s745 = sld [smem:[#allocation7 + $0x283]]
    %v746 = vstv %s745
    %v747 = vmul.f32 %v746, %v447
    %749 = vrot.lane.b32.xlu0 %v747, 4
    %v750 = vpop.permute.xlu0 %749
    %v751 = vrot.slane %v750, 6
    %v752 = vsel %vm292, %v751, %v750
    %v754 = vadd.f32 %v744, %v752
    %v755 = vmax.f32 %v754, 0.0
    %s756 = sld [smem:[#allocation8 + $0x5]]
    %v757 = vstv %s756
    %v758 = vmul.f32 %v755, %v757
    %s759 = sld [smem:[#allocation10 + $0x5]]
    %v760 = vstv %s759
    %v761 = vadd.f32 %v758, %v760
    %v764 = vunpack.c.l.s4 1966171168
    %v765 = vunpack.c.0.s8 %v764
    %v766 = vlaneseq
    %v767 = vshrl.u32 %v766, 7
    %v768 = vsub.s32 %v765, %v767
    %v769 = vrot.slane %v761, %v768
    %v770 = vcombine.high %v769, %v769
    %771 = vrot.lane.b32.xlu0 %v769, 124
    %v772 = vpop.permute.xlu0 %771
    %773 = vrot.lane.b32.xlu0 %v770, 124
    %v774 = vpop.permute.xlu0 %773
    %v775 = vrot.slane %v772, 1
    %v776 = vrot.slane %v774, 1
    %v777 = vsel %vm400, %v772, %v775
    %v778 = vsel %vm400, %v774, %v776
    %s781 = scalar_lea.vmem [#allocation12], 5
    %782 = vst.msk [vmem:[%s781] ss:$8 sm:$0x3] %vm486, %v777
    %783 = vst.msk [vmem:[%s781] ss:$8 sm:$0x0] %vm486, %v777
    %s784 = scalar_lea.vmem [#allocation12], 21
    %785 = vst.msk [vmem:[%s784] ss:$8 sm:$0x3] %vm486, %v778
    %786 = vst.msk [vmem:[%s784] ss:$8 sm:$0x0] %vm486, %v778
    %s787 = sld [smem:[#allocation7 + $0x300]]
    %v788 = vstv %s787
    %v789 = vmul.f32 %v788, %v407
    %s790 = sld [smem:[#allocation7 + $0x301]]
    %v791 = vstv %s790
    %v792 = vmul.f32 %v791, %v425
    %794 = vrot.lane.b32.xlu0 %v792, 4
    %v795 = vpop.permute.xlu0 %794
    %v796 = vrot.slane %v795, 6
    %v797 = vsel %vm292, %v796, %v795
    %v799 = vadd.f32 %v789, %v797
    %s800 = sld [smem:[#allocation7 + $0x302]]
    %v801 = vstv %s800
    %v802 = vmul.f32 %v801, %v408
    %v803 = vadd.f32 %v799, %v802
    %s804 = sld [smem:[#allocation7 + $0x303]]
    %v805 = vstv %s804
    %v806 = vmul.f32 %v805, %v447
    %808 = vrot.lane.b32.xlu0 %v806, 4
    %v809 = vpop.permute.xlu0 %808
    %v810 = vrot.slane %v809, 6
    %v811 = vsel %vm292, %v810, %v809
    %v813 = vadd.f32 %v803, %v811
    %v814 = vmax.f32 %v813, 0.0
    %s815 = sld [smem:[#allocation8 + $0x6]]
    %v816 = vstv %s815
    %v817 = vmul.f32 %v814, %v816
    %s818 = sld [smem:[#allocation10 + $0x6]]
    %v819 = vstv %s818
    %v820 = vadd.f32 %v817, %v819
    %v823 = vunpack.c.l.s4 1966171168
    %v824 = vunpack.c.0.s8 %v823
    %v825 = vlaneseq
    %v826 = vshrl.u32 %v825, 7
    %v827 = vsub.s32 %v824, %v826
    %v828 = vrot.slane %v820, %v827
    %v829 = vcombine.high %v828, %v828
    %830 = vrot.lane.b32.xlu0 %v828, 124
    %v831 = vpop.permute.xlu0 %830
    %832 = vrot.lane.b32.xlu0 %v829, 124
    %v833 = vpop.permute.xlu0 %832
    %v834 = vrot.slane %v831, 1
    %v835 = vrot.slane %v833, 1
    %v836 = vsel %vm400, %v831, %v834
    %v837 = vsel %vm400, %v833, %v835
    %s840 = scalar_lea.vmem [#allocation12], 6
    %841 = vst.msk [vmem:[%s840] ss:$8 sm:$0x3] %vm486, %v836
    %842 = vst.msk [vmem:[%s840] ss:$8 sm:$0x0] %vm486, %v836
    %s843 = scalar_lea.vmem [#allocation12], 22
    %844 = vst.msk [vmem:[%s843] ss:$8 sm:$0x3] %vm486, %v837
    %845 = vst.msk [vmem:[%s843] ss:$8 sm:$0x0] %vm486, %v837
    %s846 = sld [smem:[#allocation7 + $0x380]]
    %v847 = vstv %s846
    %v848 = vmul.f32 %v847, %v407
    %s849 = sld [smem:[#allocation7 + $0x381]]
    %v850 = vstv %s849
    %v851 = vmul.f32 %v850, %v425
    %853 = vrot.lane.b32.xlu0 %v851, 4
    %v854 = vpop.permute.xlu0 %853
    %v855 = vrot.slane %v854, 6
    %v856 = vsel %vm292, %v855, %v854
    %v858 = vadd.f32 %v848, %v856
    %s859 = sld [smem:[#allocation7 + $0x382]]
    %v860 = vstv %s859
    %v861 = vmul.f32 %v860, %v408
    %v862 = vadd.f32 %v858, %v861
    %s863 = sld [smem:[#allocation7 + $0x383]]
    %v864 = vstv %s863
    %v865 = vmul.f32 %v864, %v447
    %867 = vrot.lane.b32.xlu0 %v865, 4
    %v868 = vpop.permute.xlu0 %867
    %v869 = vrot.slane %v868, 6
    %v870 = vsel %vm292, %v869, %v868
    %v872 = vadd.f32 %v862, %v870
    %v873 = vmax.f32 %v872, 0.0
    %s874 = sld [smem:[#allocation8 + $0x7]]
    %v875 = vstv %s874
    %v876 = vmul.f32 %v873, %v875
    %s877 = sld [smem:[#allocation10 + $0x7]]
    %v878 = vstv %s877
    %v879 = vadd.f32 %v876, %v878
    %v882 = vunpack.c.l.s4 1966171168
    %v883 = vunpack.c.0.s8 %v882
    %v884 = vlaneseq
    %v885 = vshrl.u32 %v884, 7
    %v886 = vsub.s32 %v883, %v885
    %v887 = vrot.slane %v879, %v886
    %v888 = vcombine.high %v887, %v887
    %889 = vrot.lane.b32.xlu0 %v887, 124
    %v890 = vpop.permute.xlu0 %889
    %891 = vrot.lane.b32.xlu0 %v888, 124
    %v892 = vpop.permute.xlu0 %891
    %v893 = vrot.slane %v890, 1
    %v894 = vrot.slane %v892, 1
    %v895 = vsel %vm400, %v890, %v893
    %v896 = vsel %vm400, %v892, %v894
    %s899 = scalar_lea.vmem [#allocation12], 7
    %900 = vst.msk [vmem:[%s899] ss:$8 sm:$0x3] %vm486, %v895
    %901 = vst.msk [vmem:[%s899] ss:$8 sm:$0x0] %vm486, %v895
    %s902 = scalar_lea.vmem [#allocation12], 23
    %903 = vst.msk [vmem:[%s902] ss:$8 sm:$0x3] %vm486, %v896
    %904 = vst.msk [vmem:[%s902] ss:$8 sm:$0x0] %vm486, %v896
    // Predicated region
    $region50: #{tpu_custom_call.1} parent=1 // pred_check
      _
    $region51: #{tpu_custom_call.1} parent=1 // pred_check_branch
      %906 = sbr.rel (0) target = $region53
    $region52: #{tpu_custom_call.1} parent=1 // pred_region
      %s908 = ssub.s32 512, 512
      %909 = vsyncadd [#allocation4], %s908
      %s910 = sshll.u32 [#allocation12], 4
      %s911 = int_to_ptr.vmem [resolvable:$true] %s910
      %916 = dma.vmem_to_hbm [thread:$0]  %s911, 512, %s7, [#allocation4], 256, 256, 16
    $region53: #{tpu_custom_call.1} parent=1 // pred_fallthru
      _
    // Predicated region
    $region54: #{tpu_custom_call.1} parent=1 // pred_check
      _
    $region55: #{tpu_custom_call.1} parent=1 // pred_check_branch
      %918 = sbr.rel (0) target = $region57
    $region56: #{tpu_custom_call.1} parent=1 // pred_region
      %919 = dma.done [#allocation4], 512
    $region57: #{tpu_custom_call.1} parent=1 // pred_fallthru
      _
    %920 = vsyncpa [#allocation3], 1
    %921 = vsyncpa [#allocation4], 1
    %922 = vsyncpa [#allocation5], 1
    %923 = vsyncpa [#allocation6], 1
    %924 = vsyncpa [#allocation9], 1

</llo_original>
